<compile_context>
chip_gen: v6e
topology: v6e:2x2x1
jax: 0.10.0
libtpu: 0.0.40
codegen_flags: <defaults>
</compile_context>

<pallas_src>
import functools

import jax
import jax.numpy as jnp
from jax.experimental import pallas as pl
from jax.experimental.pallas import tpu as pltpu


# ---------------------------------------------------------------------------
# Constant per-tap scales: for tap (kh, kw) and output pixel (h, w):
#   valid_edge_mask(kh, kw, h, w) * mask_ratio(h, w)
# mask_ratio is tap-independent, so folding it into every tap equals scaling
# the conv output. Computed in the wrapper, passed as a (9, H*W) input.
# ---------------------------------------------------------------------------
def _tap_scales(H, W):
    h = jnp.arange(H, dtype=jnp.float32)[:, None]      # (H, 1)
    w = jnp.arange(W, dtype=jnp.float32)[None, :]      # (1, W)
    rows = jnp.minimum(h + 1.0, H - 1.0) - jnp.maximum(h - 1.0, 0.0) + 1.0
    cols = jnp.minimum(w + 1.0, W - 1.0) - jnp.maximum(w - 1.0, 0.0) + 1.0
    count = rows * cols                                 # valid pixels / window
    ratio = (9.0 / (count + 1e-8)) * jnp.clip(count, 0.0, 1.0)   # (H, W)
    scales = []
    for kh in range(3):
        for kw in range(3):
            dh, dw = kh - 1, kw - 1
            vh = ((h + dh >= 0) & (h + dh <= H - 1)).astype(jnp.float32)
            vw = ((w + dw >= 0) & (w + dw <= W - 1)).astype(jnp.float32)
            scales.append((vh * vw * ratio).reshape(H * W))
    return jnp.stack(scales, axis=0)                    # (9, H*W)


def _pack_weight(w_hwio, cin_p, cout_p):
    """(3,3,Cin,Cout) HWIO -> (cout_p, 9*cin_p) bf16.

    Column order is (kh, kw, ci) with ci padded to cin_p, i.e. column
    t*cin_p + ci for tap t = kh*3 + kw. This MUST match the tap/row order used
    when building `patches` inside the kernel.
    """
    _, _, cin, cout = w_hwio.shape
    wp = jnp.zeros((3, 3, cin_p, cout_p), jnp.float32)
    wp = wp.at[:, :, :cin, :cout].set(w_hwio.astype(jnp.float32))
    return (jnp.transpose(wp, (3, 0, 1, 2))
            .reshape(cout_p, 9 * cin_p)
            .astype(jnp.bfloat16))


# ---------------------------------------------------------------------------
# Pallas kernel: fused BasicBlock forward, everything resident in VMEM.
# ---------------------------------------------------------------------------
def _basic_block_kernel(x_ref, ts_ref, w1_ref, g1_ref, b1_ref,
                        w2_ref, g2_ref, b2_ref, out_ref, *, W, inv_cnt):
    Cp, NHW = x_ref.shape
    x = x_ref[...]          # (Cp, N*HW) f32, padded channel rows are zero
    ts = ts_ref[...]        # (9,  N*HW) f32: per-tap edge mask * mask_ratio

    def pconv(h_cm, w_ref_):
        # Partial 3x3 conv over the whole batch as ONE im2col GEMM.
        # Tap/row order (kh, kw, ci) must match _pack_weight's column order.
        chunks = []
        for kh in range(3):
            for kw in range(3):
                t = kh * 3 + kw
                # shifted[:, m] = h[:, m + (kh-1)*W + (kw-1)]; any wrap
                # (including cross-image wrap) only lands where ts[t, m] == 0.
                shift = ((1 - kh) * W + (1 - kw)) % NHW
                hs = pltpu.roll(h_cm, shift, axis=1) if shift else h_cm
                chunks.append(hs * ts[t:t + 1])
        # (9*Cp, NHW) f32: every chunk is 8-row aligned -> placement-only
        # concat; single cast to bf16 for the MXU (f32 accumulation below).
        patches = jnp.concatenate(chunks, axis=0).astype(jnp.bfloat16)
        return jnp.dot(w_ref_[...], patches,
                       preferred_element_type=jnp.float32,
                       precision=jax.lax.Precision.DEFAULT)

    def bn(y, g, b):
        # Training-mode batch stats per channel over N*H*W (biased var),
        # two-pass for numerical stability.
        mean = jnp.sum(y, axis=1, keepdims=True) * inv_cnt
        d = y - mean
        var = jnp.sum(d * d, axis=1, keepdims=True) * inv_cnt
        return d * (g * jax.lax.rsqrt(var + 1e-5)) + b

    y1 = pconv(x, w1_ref)                                     # (Cp, NHW) f32
    h1 = jnp.maximum(bn(y1, g1_ref[...], b1_ref[...]), 0.0)
    y2 = pconv(h1, w2_ref)
    h2 = bn(y2, g2_ref[...], b2_ref[...])
    # downsample is None -> identity shortcut (padded rows are zero on both).
    out_ref[...] = jnp.maximum(h2 + x, 0.0)


def basic_block_forward(x_nchw, w1, g1, b1, w2, g2, b2):
    """x_nchw: (N, C, H, W) f32. w*: (3,3,Cin,Cout) HWIO. Returns (N, C, H, W)."""
    N, C, H, W = x_nchw.shape
    Cout = w1.shape[-1]
    assert w1.shape[2] == C and w2.shape[2] == Cout and w2.shape[3] == Cout
    assert Cout == C, "identity shortcut requires inplanes == planes"
    HW, NHW = H * W, N * H * W
    Cp = ((C + 7) // 8) * 8            # sublane-align the channel axis

    # Channel-major, channel-padded activations: (Cp, N*HW) with the pixel axis
    # on lanes. (Transpose cost is negligible at this size; see module TODO for
    # the gridded real-shape layout.)
    x_cm = jnp.transpose(x_nchw, (1, 0, 2, 3)).reshape(C, NHW).astype(jnp.float32)
    x_cm = jnp.pad(x_cm, ((0, Cp - C), (0, 0)))

    w1m = _pack_weight(w1, Cp, Cp)
    w2m = _pack_weight(w2, Cp, Cp)

    def pad_cvec(v, fill):
        pad = jnp.full((Cp - Cout,), fill, jnp.float32)
        return jnp.concatenate([v.astype(jnp.float32), pad]).reshape(Cp, 1)

    ts = jnp.tile(_tap_scales(H, W), (1, N))               # (9, N*HW)

    vmem = pl.BlockSpec(memory_space=pltpu.MemorySpace.VMEM)
    out = pl.pallas_call(
        functools.partial(_basic_block_kernel, W=W, inv_cnt=1.0 / NHW),
        out_shape=jax.ShapeDtypeStruct((Cp, NHW), jnp.float32),
        in_specs=[vmem] * 8,
        out_specs=vmem,
        # Footprint here is < 1 MiB; keep the scoped limit modest so the same
        # plan also fits v7x's 64 MiB physical VMEM.
        compiler_params=pltpu.CompilerParams(vmem_limit_bytes=32 * 1024 * 1024),
    )(x_cm, ts, w1m, pad_cvec(g1, 1.0), pad_cvec(b1, 0.0),
      w2m, pad_cvec(g2, 1.0), pad_cvec(b2, 0.0))

    return jnp.transpose(out.reshape(Cp, N, H, W)[:Cout], (1, 0, 2, 3))


# ---------------------------------------------------------------------------
# Pure-JAX reference (full f32) for correctness check
# ---------------------------------------------------------------------------
def _partial_conv3x3_ref(x_nhwc, w):
    _, H, W, _ = x_nhwc.shape
    dn = ('NHWC', 'HWIO', 'NHWC')
    raw = jax.lax.conv_general_dilated(x_nhwc, w, (1, 1), ((1, 1), (1, 1)),
                                       dimension_numbers=dn)
    ones = jnp.ones((1, H, W, 1), jnp.float32)
    um = jax.lax.conv_general_dilated(ones, jnp.ones((3, 3, 1, 1), jnp.float32),
                                      (1, 1), ((1, 1), (1, 1)),
                                      dimension_numbers=dn)
    ratio = (9.0 / (um + 1e-8)) * jnp.clip(um, 0.0, 1.0)
    return raw * ratio


def _bn_ref(y, g, b):
    mean = jnp.mean(y, axis=(0, 1, 2), keepdims=True)
    var = jnp.mean((y - mean) ** 2, axis=(0, 1, 2), keepdims=True)
    return (y - mean) * jax.lax.rsqrt(var + 1e-5) * g.reshape(1, 1, 1, -1) \
        + b.reshape(1, 1, 1, -1)


def basic_block_ref(x_nchw, w1, g1, b1, w2, g2, b2):
    x = jnp.transpose(x_nchw, (0, 2, 3, 1))
    out = _partial_conv3x3_ref(x, w1)
    out = jnp.maximum(_bn_ref(out, g1, b1), 0.0)
    out = _partial_conv3x3_ref(out, w2)
    out = _bn_ref(out, g2, b2)
    out = jnp.maximum(out + x, 0.0)
    return jnp.transpose(out, (0, 3, 1, 2))


if __name__ == "__main__":
    # Reference convs stay full f32; the kernel's dots pass precision explicitly.
    jax.config.update("jax_default_matmul_precision", "highest")

    N, C, H, W = 2, 4, 16, 16          # inplanes == planes == 4, stride = 1
    planes = C

    key = jax.random.PRNGKey(0)
    kx, kw1, kw2, kg1, kb1, kg2, kb2 = jax.random.split(key, 7)

    x = jax.random.normal(kx, (N, C, H, W), jnp.float32)

    # conv weights, stored HWIO (3,3,Cin,Cout); kaiming-ish scale
    w1 = jax.random.normal(kw1, (3, 3, C, planes), jnp.float32) / jnp.sqrt(9.0 * C)
    w2 = jax.random.normal(kw2, (3, 3, planes, planes), jnp.float32) / jnp.sqrt(9.0 * planes)

    # BN affine params (deterministic, non-trivial)
    g1 = 1.0 + 0.1 * jax.random.normal(kg1, (planes,), jnp.float32)
    b1 = 0.1 * jax.random.normal(kb1, (planes,), jnp.float32)
    g2 = 1.0 + 0.1 * jax.random.normal(kg2, (planes,), jnp.float32)
    b2 = 0.1 * jax.random.normal(kb2, (planes,), jnp.float32)

    run = jax.jit(basic_block_forward)
    out = jax.block_until_ready(run(x, w1, g1, b1, w2, g2, b2))
    ref = jax.block_until_ready(basic_block_ref(x, w1, g1, b1, w2, g2, b2))

    assert out.shape == (N, planes, H, W)
    assert bool(jnp.all(jnp.isfinite(out)))

    # Kernel feeds the MXU bf16 operands (f32 accumulation); reference is full
    # f32, so allow bf16-level rounding. The mean-error check is the tight
    # structural guard (structural bugs produce mean errors >> 1e-1).
    err = jnp.abs(out - ref)
    max_err = float(jnp.max(err))
    mean_err = float(jnp.mean(err))
    assert max_err < 1.5e-1, f"max abs diff = {max_err}"
    assert mean_err < 1.5e-2, f"mean abs diff = {mean_err}"

    print("KERNEL_OK")
</pallas_src>

<mosaic_0001>
module attributes {stable_mosaic.version = 11 : i64} {
  func.func @_basic_block_kernel(%arg0: memref<8x512xf32, #tpu.memory_space<vmem>>, %arg1: memref<9x512xf32, #tpu.memory_space<vmem>>, %arg2: memref<8x72xbf16, #tpu.memory_space<vmem>>, %arg3: memref<8x1xf32, #tpu.memory_space<vmem>>, %arg4: memref<8x1xf32, #tpu.memory_space<vmem>>, %arg5: memref<8x72xbf16, #tpu.memory_space<vmem>>, %arg6: memref<8x1xf32, #tpu.memory_space<vmem>>, %arg7: memref<8x1xf32, #tpu.memory_space<vmem>>, %arg8: memref<8x512xf32, #tpu.memory_space<vmem>>) attributes {dimension_semantics = [], scalar_prefetch = 0 : i64, scratch_operands = 0 : i64, tpu.core_type = #tpu.core_type<tc>} {
    %c0 = arith.constant 0 : index
    %c0_0 = arith.constant 0 : index
    %0 = vector.load %arg0[%c0, %c0_0] : memref<8x512xf32, #tpu.memory_space<vmem>>, vector<8x512xf32>
    %c0_1 = arith.constant 0 : index
    %c0_2 = arith.constant 0 : index
    %1 = vector.load %arg1[%c0_1, %c0_2] : memref<9x512xf32, #tpu.memory_space<vmem>>, vector<9x512xf32>
    %c17_i32 = arith.constant 17 : i32
    %2 = tpu.dynamic_rotate %0 by %c17_i32 dim 1 : vector<8x512xf32>, i32 -> vector<8x512xf32>
    %3 = vector.extract_strided_slice %1 {offsets = [0, 0], sizes = [1, 512], strides = [1, 1]} : vector<9x512xf32> to vector<1x512xf32>
    %4 = vector.broadcast %3 : vector<1x512xf32> to vector<8x512xf32>
    %5 = arith.mulf %2, %4 : vector<8x512xf32>
    %c16_i32 = arith.constant 16 : i32
    %6 = tpu.dynamic_rotate %0 by %c16_i32 dim 1 : vector<8x512xf32>, i32 -> vector<8x512xf32>
    %7 = vector.extract_strided_slice %1 {offsets = [1, 0], sizes = [1, 512], strides = [1, 1]} : vector<9x512xf32> to vector<1x512xf32>
    %8 = vector.broadcast %7 : vector<1x512xf32> to vector<8x512xf32>
    %9 = arith.mulf %6, %8 : vector<8x512xf32>
    %c15_i32 = arith.constant 15 : i32
    %10 = tpu.dynamic_rotate %0 by %c15_i32 dim 1 : vector<8x512xf32>, i32 -> vector<8x512xf32>
    %11 = vector.extract_strided_slice %1 {offsets = [2, 0], sizes = [1, 512], strides = [1, 1]} : vector<9x512xf32> to vector<1x512xf32>
    %12 = vector.broadcast %11 : vector<1x512xf32> to vector<8x512xf32>
    %13 = arith.mulf %10, %12 : vector<8x512xf32>
    %c1_i32 = arith.constant 1 : i32
    %14 = tpu.dynamic_rotate %0 by %c1_i32 dim 1 : vector<8x512xf32>, i32 -> vector<8x512xf32>
    %15 = vector.extract_strided_slice %1 {offsets = [3, 0], sizes = [1, 512], strides = [1, 1]} : vector<9x512xf32> to vector<1x512xf32>
    %16 = vector.broadcast %15 : vector<1x512xf32> to vector<8x512xf32>
    %17 = arith.mulf %14, %16 : vector<8x512xf32>
    %18 = vector.extract_strided_slice %1 {offsets = [4, 0], sizes = [1, 512], strides = [1, 1]} : vector<9x512xf32> to vector<1x512xf32>
    %19 = vector.broadcast %18 : vector<1x512xf32> to vector<8x512xf32>
    %20 = arith.mulf %0, %19 : vector<8x512xf32>
    %c511_i32 = arith.constant 511 : i32
    %21 = tpu.dynamic_rotate %0 by %c511_i32 dim 1 : vector<8x512xf32>, i32 -> vector<8x512xf32>
    %22 = vector.extract_strided_slice %1 {offsets = [5, 0], sizes = [1, 512], strides = [1, 1]} : vector<9x512xf32> to vector<1x512xf32>
    %23 = vector.broadcast %22 : vector<1x512xf32> to vector<8x512xf32>
    %24 = arith.mulf %21, %23 : vector<8x512xf32>
    %c497_i32 = arith.constant 497 : i32
    %25 = tpu.dynamic_rotate %0 by %c497_i32 dim 1 : vector<8x512xf32>, i32 -> vector<8x512xf32>
    %26 = vector.extract_strided_slice %1 {offsets = [6, 0], sizes = [1, 512], strides = [1, 1]} : vector<9x512xf32> to vector<1x512xf32>
    %27 = vector.broadcast %26 : vector<1x512xf32> to vector<8x512xf32>
    %28 = arith.mulf %25, %27 : vector<8x512xf32>
    %c496_i32 = arith.constant 496 : i32
    %29 = tpu.dynamic_rotate %0 by %c496_i32 dim 1 : vector<8x512xf32>, i32 -> vector<8x512xf32>
    %30 = vector.extract_strided_slice %1 {offsets = [7, 0], sizes = [1, 512], strides = [1, 1]} : vector<9x512xf32> to vector<1x512xf32>
    %31 = vector.broadcast %30 : vector<1x512xf32> to vector<8x512xf32>
    %32 = arith.mulf %29, %31 : vector<8x512xf32>
    %c495_i32 = arith.constant 495 : i32
    %33 = tpu.dynamic_rotate %0 by %c495_i32 dim 1 : vector<8x512xf32>, i32 -> vector<8x512xf32>
    %34 = vector.extract_strided_slice %1 {offsets = [8, 0], sizes = [1, 512], strides = [1, 1]} : vector<9x512xf32> to vector<1x512xf32>
    %35 = vector.broadcast %34 : vector<1x512xf32> to vector<8x512xf32>
    %36 = arith.mulf %33, %35 : vector<8x512xf32>
    %37 = tpu.concatenate %5, %9, %13, %17, %20, %24, %28, %32, %36 in 0 : vector<8x512xf32>, vector<8x512xf32>, vector<8x512xf32>, vector<8x512xf32>, vector<8x512xf32>, vector<8x512xf32>, vector<8x512xf32>, vector<8x512xf32>, vector<8x512xf32> -> vector<72x512xf32>
    %38 = arith.truncf %37 : vector<72x512xf32> to vector<72x512xbf16>
    %c0_3 = arith.constant 0 : index
    %c0_4 = arith.constant 0 : index
    %39 = vector.load %arg2[%c0_3, %c0_4] : memref<8x72xbf16, #tpu.memory_space<vmem>>, vector<8x72xbf16>
    %cst = arith.constant dense<0.000000e+00> : vector<8x512xf32>
    %40 = tpu.matmul %39, %38, %cst {dimension_numbers = #tpu.dot_dimension_numbers<[1], [0], [0], [1], [0, 0, 1, 1], [], []>} : vector<8x72xbf16>, vector<72x512xbf16>, vector<8x512xf32> -> vector<8x512xf32>
    %c0_5 = arith.constant 0 : index
    %c0_6 = arith.constant 0 : index
    %41 = vector.load %arg3[%c0_5, %c0_6] : memref<8x1xf32, #tpu.memory_space<vmem>>, vector<8x1xf32>
    %c0_7 = arith.constant 0 : index
    %c0_8 = arith.constant 0 : index
    %42 = vector.load %arg4[%c0_7, %c0_8] : memref<8x1xf32, #tpu.memory_space<vmem>>, vector<8x1xf32>
    %cst_9 = arith.constant dense<0.000000e+00> : vector<8xf32>
    %43 = vector.multi_reduction <add>, %40, %cst_9 [1] : vector<8x512xf32> to vector<8xf32>
    %44 = vector.shape_cast %43 : vector<8xf32> to vector<8x1xf32>
    %cst_10 = arith.constant 0.001953125 : f32
    %45 = vector.broadcast %cst_10 : f32 to vector<8x1xf32>
    %46 = arith.mulf %44, %45 : vector<8x1xf32>
    %47 = vector.broadcast %46 : vector<8x1xf32> to vector<8x512xf32>
    %48 = arith.subf %40, %47 : vector<8x512xf32>
    %49 = arith.mulf %48, %48 : vector<8x512xf32>
    %cst_11 = arith.constant dense<0.000000e+00> : vector<8xf32>
    %50 = vector.multi_reduction <add>, %49, %cst_11 [1] : vector<8x512xf32> to vector<8xf32>
    %51 = vector.shape_cast %50 : vector<8xf32> to vector<8x1xf32>
    %cst_12 = arith.constant 0.001953125 : f32
    %52 = vector.broadcast %cst_12 : f32 to vector<8x1xf32>
    %53 = arith.mulf %51, %52 : vector<8x1xf32>
    %cst_13 = arith.constant 9.99999974E-6 : f32
    %54 = vector.broadcast %cst_13 : f32 to vector<8x1xf32>
    %55 = arith.addf %53, %54 : vector<8x1xf32>
    %56 = math.rsqrt %55 : vector<8x1xf32>
    %57 = arith.mulf %41, %56 : vector<8x1xf32>
    %58 = vector.broadcast %57 : vector<8x1xf32> to vector<8x512xf32>
    %59 = arith.mulf %48, %58 : vector<8x512xf32>
    %60 = vector.broadcast %42 : vector<8x1xf32> to vector<8x512xf32>
    %61 = arith.addf %59, %60 : vector<8x512xf32>
    %cst_14 = arith.constant 0.000000e+00 : f32
    %62 = vector.broadcast %cst_14 : f32 to vector<8x512xf32>
    %63 = arith.maximumf %61, %62 : vector<8x512xf32>
    %c17_i32_15 = arith.constant 17 : i32
    %64 = tpu.dynamic_rotate %63 by %c17_i32_15 dim 1 : vector<8x512xf32>, i32 -> vector<8x512xf32>
    %65 = vector.extract_strided_slice %1 {offsets = [0, 0], sizes = [1, 512], strides = [1, 1]} : vector<9x512xf32> to vector<1x512xf32>
    %66 = vector.broadcast %65 : vector<1x512xf32> to vector<8x512xf32>
    %67 = arith.mulf %64, %66 : vector<8x512xf32>
    %c16_i32_16 = arith.constant 16 : i32
    %68 = tpu.dynamic_rotate %63 by %c16_i32_16 dim 1 : vector<8x512xf32>, i32 -> vector<8x512xf32>
    %69 = vector.extract_strided_slice %1 {offsets = [1, 0], sizes = [1, 512], strides = [1, 1]} : vector<9x512xf32> to vector<1x512xf32>
    %70 = vector.broadcast %69 : vector<1x512xf32> to vector<8x512xf32>
    %71 = arith.mulf %68, %70 : vector<8x512xf32>
    %c15_i32_17 = arith.constant 15 : i32
    %72 = tpu.dynamic_rotate %63 by %c15_i32_17 dim 1 : vector<8x512xf32>, i32 -> vector<8x512xf32>
    %73 = vector.extract_strided_slice %1 {offsets = [2, 0], sizes = [1, 512], strides = [1, 1]} : vector<9x512xf32> to vector<1x512xf32>
    %74 = vector.broadcast %73 : vector<1x512xf32> to vector<8x512xf32>
    %75 = arith.mulf %72, %74 : vector<8x512xf32>
    %c1_i32_18 = arith.constant 1 : i32
    %76 = tpu.dynamic_rotate %63 by %c1_i32_18 dim 1 : vector<8x512xf32>, i32 -> vector<8x512xf32>
    %77 = vector.extract_strided_slice %1 {offsets = [3, 0], sizes = [1, 512], strides = [1, 1]} : vector<9x512xf32> to vector<1x512xf32>
    %78 = vector.broadcast %77 : vector<1x512xf32> to vector<8x512xf32>
    %79 = arith.mulf %76, %78 : vector<8x512xf32>
    %80 = vector.extract_strided_slice %1 {offsets = [4, 0], sizes = [1, 512], strides = [1, 1]} : vector<9x512xf32> to vector<1x512xf32>
    %81 = vector.broadcast %80 : vector<1x512xf32> to vector<8x512xf32>
    %82 = arith.mulf %63, %81 : vector<8x512xf32>
    %c511_i32_19 = arith.constant 511 : i32
    %83 = tpu.dynamic_rotate %63 by %c511_i32_19 dim 1 : vector<8x512xf32>, i32 -> vector<8x512xf32>
    %84 = vector.extract_strided_slice %1 {offsets = [5, 0], sizes = [1, 512], strides = [1, 1]} : vector<9x512xf32> to vector<1x512xf32>
    %85 = vector.broadcast %84 : vector<1x512xf32> to vector<8x512xf32>
    %86 = arith.mulf %83, %85 : vector<8x512xf32>
    %c497_i32_20 = arith.constant 497 : i32
    %87 = tpu.dynamic_rotate %63 by %c497_i32_20 dim 1 : vector<8x512xf32>, i32 -> vector<8x512xf32>
    %88 = vector.extract_strided_slice %1 {offsets = [6, 0], sizes = [1, 512], strides = [1, 1]} : vector<9x512xf32> to vector<1x512xf32>
    %89 = vector.broadcast %88 : vector<1x512xf32> to vector<8x512xf32>
    %90 = arith.mulf %87, %89 : vector<8x512xf32>
    %c496_i32_21 = arith.constant 496 : i32
    %91 = tpu.dynamic_rotate %63 by %c496_i32_21 dim 1 : vector<8x512xf32>, i32 -> vector<8x512xf32>
    %92 = vector.extract_strided_slice %1 {offsets = [7, 0], sizes = [1, 512], strides = [1, 1]} : vector<9x512xf32> to vector<1x512xf32>
    %93 = vector.broadcast %92 : vector<1x512xf32> to vector<8x512xf32>
    %94 = arith.mulf %91, %93 : vector<8x512xf32>
    %c495_i32_22 = arith.constant 495 : i32
    %95 = tpu.dynamic_rotate %63 by %c495_i32_22 dim 1 : vector<8x512xf32>, i32 -> vector<8x512xf32>
    %96 = vector.extract_strided_slice %1 {offsets = [8, 0], sizes = [1, 512], strides = [1, 1]} : vector<9x512xf32> to vector<1x512xf32>
    %97 = vector.broadcast %96 : vector<1x512xf32> to vector<8x512xf32>
    %98 = arith.mulf %95, %97 : vector<8x512xf32>
    %99 = tpu.concatenate %67, %71, %75, %79, %82, %86, %90, %94, %98 in 0 : vector<8x512xf32>, vector<8x512xf32>, vector<8x512xf32>, vector<8x512xf32>, vector<8x512xf32>, vector<8x512xf32>, vector<8x512xf32>, vector<8x512xf32>, vector<8x512xf32> -> vector<72x512xf32>
    %100 = arith.truncf %99 : vector<72x512xf32> to vector<72x512xbf16>
    %c0_23 = arith.constant 0 : index
    %c0_24 = arith.constant 0 : index
    %101 = vector.load %arg5[%c0_23, %c0_24] : memref<8x72xbf16, #tpu.memory_space<vmem>>, vector<8x72xbf16>
    %cst_25 = arith.constant dense<0.000000e+00> : vector<8x512xf32>
    %102 = tpu.matmul %101, %100, %cst_25 {dimension_numbers = #tpu.dot_dimension_numbers<[1], [0], [0], [1], [0, 0, 1, 1], [], []>} : vector<8x72xbf16>, vector<72x512xbf16>, vector<8x512xf32> -> vector<8x512xf32>
    %c0_26 = arith.constant 0 : index
    %c0_27 = arith.constant 0 : index
    %103 = vector.load %arg6[%c0_26, %c0_27] : memref<8x1xf32, #tpu.memory_space<vmem>>, vector<8x1xf32>
    %c0_28 = arith.constant 0 : index
    %c0_29 = arith.constant 0 : index
    %104 = vector.load %arg7[%c0_28, %c0_29] : memref<8x1xf32, #tpu.memory_space<vmem>>, vector<8x1xf32>
    %cst_30 = arith.constant dense<0.000000e+00> : vector<8xf32>
    %105 = vector.multi_reduction <add>, %102, %cst_30 [1] : vector<8x512xf32> to vector<8xf32>
    %106 = vector.shape_cast %105 : vector<8xf32> to vector<8x1xf32>
    %cst_31 = arith.constant 0.001953125 : f32
    %107 = vector.broadcast %cst_31 : f32 to vector<8x1xf32>
    %108 = arith.mulf %106, %107 : vector<8x1xf32>
    %109 = vector.broadcast %108 : vector<8x1xf32> to vector<8x512xf32>
    %110 = arith.subf %102, %109 : vector<8x512xf32>
    %111 = arith.mulf %110, %110 : vector<8x512xf32>
    %cst_32 = arith.constant dense<0.000000e+00> : vector<8xf32>
    %112 = vector.multi_reduction <add>, %111, %cst_32 [1] : vector<8x512xf32> to vector<8xf32>
    %113 = vector.shape_cast %112 : vector<8xf32> to vector<8x1xf32>
    %cst_33 = arith.constant 0.001953125 : f32
    %114 = vector.broadcast %cst_33 : f32 to vector<8x1xf32>
    %115 = arith.mulf %113, %114 : vector<8x1xf32>
    %cst_34 = arith.constant 9.99999974E-6 : f32
    %116 = vector.broadcast %cst_34 : f32 to vector<8x1xf32>
    %117 = arith.addf %115, %116 : vector<8x1xf32>
    %118 = math.rsqrt %117 : vector<8x1xf32>
    %119 = arith.mulf %103, %118 : vector<8x1xf32>
    %120 = vector.broadcast %119 : vector<8x1xf32> to vector<8x512xf32>
    %121 = arith.mulf %110, %120 : vector<8x512xf32>
    %122 = vector.broadcast %104 : vector<8x1xf32> to vector<8x512xf32>
    %123 = arith.addf %121, %122 : vector<8x512xf32>
    %124 = arith.addf %123, %0 : vector<8x512xf32>
    %cst_35 = arith.constant 0.000000e+00 : f32
    %125 = vector.broadcast %cst_35 : f32 to vector<8x512xf32>
    %126 = arith.maximumf %124, %125 : vector<8x512xf32>
    %c0_36 = arith.constant 0 : index
    %c0_37 = arith.constant 0 : index
    %127 = vector.load %arg8[%c0_36, %c0_37] : memref<8x512xf32, #tpu.memory_space<vmem>>, vector<8x512xf32>
    tpu.vector_store %arg8[%c0_36, %c0_37], %126 {strides = array<i32>} : memref<8x512xf32, #tpu.memory_space<vmem>>, vector<8x512xf32>,
    return
  }
}

</mosaic_0001>

<llo_original>
// kernel: basic_block_forward.1
$region0: #{basic_block_forward.1}
  #allocation0 [shape = 'u32[]', space=smem, size = 0x4, offset = 0x4, fixed_abs, tag = 'smem constant byte address 0x4 - core index']
  #allocation1 [shape = 'u32[144,128]{1,0:T(1,128)}', space=vmem, size = 0x12000, scoped, tag = 'internal scratch']
  %s0 = inlined_call_operand.vmem [shape: f32[8,512], index: 0, kind: input, shape index: {}]
  %s1 = inlined_call_operand.vmem [shape: f32[9,512], index: 1, kind: input, shape index: {}]
  %s2 = inlined_call_operand.vmem [shape: bf16[8,72], index: 2, kind: input, shape index: {}]
  %s3 = inlined_call_operand.vmem [shape: f32[8,1], index: 3, kind: input, shape index: {}]
  %s4 = inlined_call_operand.vmem [shape: f32[8,1], index: 4, kind: input, shape index: {}]
  %s5 = inlined_call_operand.vmem [shape: bf16[8,72], index: 5, kind: input, shape index: {}]
  %s6 = inlined_call_operand.vmem [shape: f32[8,1], index: 6, kind: input, shape index: {}]
  %s7 = inlined_call_operand.vmem [shape: f32[8,1], index: 7, kind: input, shape index: {}]
  %s8 = inlined_call_operand.vmem [shape: f32[8,512], index: 8, kind: output, shape index: {}]
  %s9 = sld [smem:[#allocation0]]
  $region42: #{basic_block_forward.1} parent=0
    _
  %s11 = ssub.s32 1, %s9
  %s12 = scalar_select 0, %s11, %s9
  // Predicated region
  $region2: #{basic_block_forward.1} parent=0 // pred_check
    _
  $region3: #{basic_block_forward.1} parent=0 // pred_check_branch
    %14 = sbr.rel (0) target = $region5
  $region4: #{basic_block_forward.1} parent=0 // pred_region
    _
  $region5: #{basic_block_forward.1} parent=0 // pred_fallthru
    _
  // Predicated region
  $region6: #{basic_block_forward.1} parent=0 // pred_check
    _
  $region7: #{basic_block_forward.1} parent=0 // pred_check_branch
    %16 = sbr.rel (0) target = $region9
  $region8: #{basic_block_forward.1} parent=0 // pred_region
    _
  $region9: #{basic_block_forward.1} parent=0 // pred_fallthru
    _
  // Predicated region
  $region10: #{basic_block_forward.1} parent=0 // pred_check
    _
  $region11: #{basic_block_forward.1} parent=0 // pred_check_branch
    %18 = sbr.rel (0) target = $region13
  $region12: #{basic_block_forward.1} parent=0 // pred_region
    _
  $region13: #{basic_block_forward.1} parent=0 // pred_fallthru
    _
  // Predicated region
  $region14: #{basic_block_forward.1} parent=0 // pred_check
    _
  $region15: #{basic_block_forward.1} parent=0 // pred_check_branch
    %20 = sbr.rel (0) target = $region17
  $region16: #{basic_block_forward.1} parent=0 // pred_region
    _
  $region17: #{basic_block_forward.1} parent=0 // pred_fallthru
    _
  // Predicated region
  $region18: #{basic_block_forward.1} parent=0 // pred_check
    _
  $region19: #{basic_block_forward.1} parent=0 // pred_check_branch
    %22 = sbr.rel (0) target = $region21
  $region20: #{basic_block_forward.1} parent=0 // pred_region
    _
  $region21: #{basic_block_forward.1} parent=0 // pred_fallthru
    _
  // Predicated region
  $region22: #{basic_block_forward.1} parent=0 // pred_check
    _
  $region23: #{basic_block_forward.1} parent=0 // pred_check_branch
    %24 = sbr.rel (0) target = $region25
  $region24: #{basic_block_forward.1} parent=0 // pred_region
    _
  $region25: #{basic_block_forward.1} parent=0 // pred_fallthru
    _
  // Predicated region
  $region26: #{basic_block_forward.1} parent=0 // pred_check
    _
  $region27: #{basic_block_forward.1} parent=0 // pred_check_branch
    %26 = sbr.rel (0) target = $region29
  $region28: #{basic_block_forward.1} parent=0 // pred_region
    _
  $region29: #{basic_block_forward.1} parent=0 // pred_fallthru
    _
  // Predicated region
  $region30: #{basic_block_forward.1} parent=0 // pred_check
    _
  $region31: #{basic_block_forward.1} parent=0 // pred_check_branch
    %28 = sbr.rel (0) target = $region33
  $region32: #{basic_block_forward.1} parent=0 // pred_region
    _
  $region33: #{basic_block_forward.1} parent=0 // pred_fallthru
    _
  %v30 = vld [vmem:[%s0] sm:$0xff]
  %v31 = vld [vmem:[%s0 + $0x8] sm:$0xff]
  %v32 = vld [vmem:[%s0 + $0x10] sm:$0xff]
  %v33 = vld [vmem:[%s0 + $0x18] sm:$0xff]
  %v34 = vld [vmem:[%s1] sm:$0xff]
  %v35 = vld [vmem:[%s1 + $0x8] sm:$0xff]
  %v36 = vld [vmem:[%s1 + $0x10] sm:$0xff]
  %v37 = vld [vmem:[%s1 + $0x18] sm:$0xff]
  %v38 = vld [vmem:[%s1 + $0x20] sm:$0x1]
  %v39 = vld [vmem:[%s1 + $0x28] sm:$0x1]
  %v40 = vld [vmem:[%s1 + $0x30] sm:$0x1]
  %v41 = vld [vmem:[%s1 + $0x38] sm:$0x1]
  %42 = vrot.lane.b32.xlu0 %v30, 17
  %v43 = vpop.permute.xlu0 %42
  %44 = vrot.lane.b32.xlu0 %v31, 17
  %v45 = vpop.permute.xlu0 %44
  %46 = vrot.lane.b32.xlu0 %v32, 17
  %v47 = vpop.permute.xlu0 %46
  %48 = vrot.lane.b32.xlu0 %v33, 17
  %v49 = vpop.permute.xlu0 %48
  %v50 = vlaneseq
  %v51 = vand.u32 %v50, 127
  %vm52 = vcmp.lt.s32.totalorder %v51, 17
  %v53 = vsel %vm52, %v47, %v49
  %v54 = vsel %vm52, %v45, %v47
  %v55 = vsel %vm52, %v43, %v45
  %v56 = vsel %vm52, %v49, %v43
  %v57 = vlaneseq
  %v58 = vshrl.u32 %v57, 7
  %v59 = vsub.s32 0, %v58
  %v60 = vrot.slane %v34, %v59
  %v61 = vlaneseq
  %v62 = vshrl.u32 %v61, 7
  %v63 = vsub.s32 0, %v62
  %v64 = vrot.slane %v35, %v63
  %v65 = vlaneseq
  %v66 = vshrl.u32 %v65, 7
  %v67 = vsub.s32 0, %v66
  %v68 = vrot.slane %v36, %v67
  %v69 = vlaneseq
  %v70 = vshrl.u32 %v69, 7
  %v71 = vsub.s32 0, %v70
  %v72 = vrot.slane %v37, %v71
  %v73 = vmul.f32 %v56, %v60
  %v74 = vmul.f32 %v55, %v64
  %v75 = vmul.f32 %v54, %v68
  %v76 = vmul.f32 %v53, %v72
  %77 = vrot.lane.b32.xlu0 %v30, 16
  %v78 = vpop.permute.xlu0 %77
  %79 = vrot.lane.b32.xlu0 %v31, 16
  %v80 = vpop.permute.xlu0 %79
  %81 = vrot.lane.b32.xlu0 %v32, 16
  %v82 = vpop.permute.xlu0 %81
  %83 = vrot.lane.b32.xlu0 %v33, 16
  %v84 = vpop.permute.xlu0 %83
  %vm85 = vcmp.lt.s32.totalorder %v51, 16
  %v86 = vsel %vm85, %v82, %v84
  %v87 = vsel %vm85, %v80, %v82
  %v88 = vsel %vm85, %v78, %v80
  %v89 = vsel %vm85, %v84, %v78
  %v90 = vlaneseq
  %v91 = vshrl.u32 %v90, 7
  %v92 = vsub.s32 1, %v91
  %v93 = vrot.slane %v34, %v92
  %v94 = vlaneseq
  %v95 = vshrl.u32 %v94, 7
  %v96 = vsub.s32 1, %v95
  %v97 = vrot.slane %v35, %v96
  %v98 = vlaneseq
  %v99 = vshrl.u32 %v98, 7
  %v100 = vsub.s32 1, %v99
  %v101 = vrot.slane %v36, %v100
  %v102 = vlaneseq
  %v103 = vshrl.u32 %v102, 7
  %v104 = vsub.s32 1, %v103
  %v105 = vrot.slane %v37, %v104
  %v106 = vmul.f32 %v89, %v93
  %v107 = vmul.f32 %v88, %v97
  %v108 = vmul.f32 %v87, %v101
  %v109 = vmul.f32 %v86, %v105
  %110 = vrot.lane.b32.xlu0 %v30, 15
  %v111 = vpop.permute.xlu0 %110
  %112 = vrot.lane.b32.xlu0 %v31, 15
  %v113 = vpop.permute.xlu0 %112
  %114 = vrot.lane.b32.xlu0 %v32, 15
  %v115 = vpop.permute.xlu0 %114
  %116 = vrot.lane.b32.xlu0 %v33, 15
  %v117 = vpop.permute.xlu0 %116
  %vm118 = vcmp.lt.s32.totalorder %v51, 15
  %v119 = vsel %vm118, %v115, %v117
  %v120 = vsel %vm118, %v113, %v115
  %v121 = vsel %vm118, %v111, %v113
  %v122 = vsel %vm118, %v117, %v111
  %v123 = vlaneseq
  %v124 = vshrl.u32 %v123, 7
  %v125 = vsub.s32 2, %v124
  %v126 = vrot.slane %v34, %v125
  %v127 = vlaneseq
  %v128 = vshrl.u32 %v127, 7
  %v129 = vsub.s32 2, %v128
  %v130 = vrot.slane %v35, %v129
  %v131 = vlaneseq
  %v132 = vshrl.u32 %v131, 7
  %v133 = vsub.s32 2, %v132
  %v134 = vrot.slane %v36, %v133
  %v135 = vlaneseq
  %v136 = vshrl.u32 %v135, 7
  %v137 = vsub.s32 2, %v136
  %v138 = vrot.slane %v37, %v137
  %v139 = vmul.f32 %v122, %v126
  %v140 = vmul.f32 %v121, %v130
  %v141 = vmul.f32 %v120, %v134
  %v142 = vmul.f32 %v119, %v138
  %143 = vrot.lane.b32.xlu0 %v30, 1
  %v144 = vpop.permute.xlu0 %143
  %145 = vrot.lane.b32.xlu0 %v31, 1
  %v146 = vpop.permute.xlu0 %145
  %147 = vrot.lane.b32.xlu0 %v32, 1
  %v148 = vpop.permute.xlu0 %147
  %149 = vrot.lane.b32.xlu0 %v33, 1
  %v150 = vpop.permute.xlu0 %149
  %vm151 = vcmp.lt.s32.totalorder %v51, 1
  %v152 = vsel %vm151, %v148, %v150
  %v153 = vsel %vm151, %v146, %v148
  %v154 = vsel %vm151, %v144, %v146
  %v155 = vsel %vm151, %v150, %v144
  %v156 = vlaneseq
  %v157 = vshrl.u32 %v156, 7
  %v158 = vsub.s32 3, %v157
  %v159 = vrot.slane %v34, %v158
  %v160 = vlaneseq
  %v161 = vshrl.u32 %v160, 7
  %v162 = vsub.s32 3, %v161
  %v163 = vrot.slane %v35, %v162
  %v164 = vlaneseq
  %v165 = vshrl.u32 %v164, 7
  %v166 = vsub.s32 3, %v165
  %v167 = vrot.slane %v36, %v166
  %v168 = vlaneseq
  %v169 = vshrl.u32 %v168, 7
  %v170 = vsub.s32 3, %v169
  %v171 = vrot.slane %v37, %v170
  %v172 = vmul.f32 %v155, %v159
  %v173 = vmul.f32 %v154, %v163
  %v174 = vmul.f32 %v153, %v167
  %v175 = vmul.f32 %v152, %v171
  %v176 = vlaneseq
  %v177 = vshrl.u32 %v176, 7
  %v178 = vsub.s32 4, %v177
  %v179 = vrot.slane %v34, %v178
  %v180 = vlaneseq
  %v181 = vshrl.u32 %v180, 7
  %v182 = vsub.s32 4, %v181
  %v183 = vrot.slane %v35, %v182
  %v184 = vlaneseq
  %v185 = vshrl.u32 %v184, 7
  %v186 = vsub.s32 4, %v185
  %v187 = vrot.slane %v36, %v186
  %v188 = vlaneseq
  %v189 = vshrl.u32 %v188, 7
  %v190 = vsub.s32 4, %v189
  %v191 = vrot.slane %v37, %v190
  %v192 = vmul.f32 %v30, %v179
  %v193 = vmul.f32 %v31, %v183
  %v194 = vmul.f32 %v32, %v187
  %v195 = vmul.f32 %v33, %v191
  %196 = vrot.lane.b32.xlu0 %v30, 127
  %v197 = vpop.permute.xlu0 %196
  %198 = vrot.lane.b32.xlu0 %v31, 127
  %v199 = vpop.permute.xlu0 %198
  %200 = vrot.lane.b32.xlu0 %v32, 127
  %v201 = vpop.permute.xlu0 %200
  %202 = vrot.lane.b32.xlu0 %v33, 127
  %v203 = vpop.permute.xlu0 %202
  %vm204 = vcmp.lt.s32.totalorder %v51, 127
  %v205 = vsel %vm204, %v201, %v203
  %v206 = vsel %vm204, %v199, %v201
  %v207 = vsel %vm204, %v197, %v199
  %v208 = vsel %vm204, %v203, %v197
  %v209 = vlaneseq
  %v210 = vshrl.u32 %v209, 7
  %v211 = vsub.s32 5, %v210
  %v212 = vrot.slane %v34, %v211
  %v213 = vlaneseq
  %v214 = vshrl.u32 %v213, 7
  %v215 = vsub.s32 5, %v214
  %v216 = vrot.slane %v35, %v215
  %v217 = vlaneseq
  %v218 = vshrl.u32 %v217, 7
  %v219 = vsub.s32 5, %v218
  %v220 = vrot.slane %v36, %v219
  %v221 = vlaneseq
  %v222 = vshrl.u32 %v221, 7
  %v223 = vsub.s32 5, %v222
  %v224 = vrot.slane %v37, %v223
  %v225 = vmul.f32 %v207, %v212
  %v226 = vmul.f32 %v206, %v216
  %v227 = vmul.f32 %v205, %v220
  %v228 = vmul.f32 %v208, %v224
  %229 = vrot.lane.b32.xlu0 %v30, 113
  %v230 = vpop.permute.xlu0 %229
  %231 = vrot.lane.b32.xlu0 %v31, 113
  %v232 = vpop.permute.xlu0 %231
  %233 = vrot.lane.b32.xlu0 %v32, 113
  %v234 = vpop.permute.xlu0 %233
  %235 = vrot.lane.b32.xlu0 %v33, 113
  %v236 = vpop.permute.xlu0 %235
  %vm237 = vcmp.lt.s32.totalorder %v51, 113
  %v238 = vsel %vm237, %v234, %v236
  %v239 = vsel %vm237, %v232, %v234
  %v240 = vsel %vm237, %v230, %v232
  %v241 = vsel %vm237, %v236, %v230
  %v242 = vlaneseq
  %v243 = vshrl.u32 %v242, 7
  %v244 = vsub.s32 6, %v243
  %v245 = vrot.slane %v34, %v244
  %v246 = vlaneseq
  %v247 = vshrl.u32 %v246, 7
  %v248 = vsub.s32 6, %v247
  %v249 = vrot.slane %v35, %v248
  %v250 = vlaneseq
  %v251 = vshrl.u32 %v250, 7
  %v252 = vsub.s32 6, %v251
  %v253 = vrot.slane %v36, %v252
  %v254 = vlaneseq
  %v255 = vshrl.u32 %v254, 7
  %v256 = vsub.s32 6, %v255
  %v257 = vrot.slane %v37, %v256
  %v258 = vmul.f32 %v240, %v245
  %v259 = vmul.f32 %v239, %v249
  %v260 = vmul.f32 %v238, %v253
  %v261 = vmul.f32 %v241, %v257
  %262 = vrot.lane.b32.xlu0 %v30, 112
  %v263 = vpop.permute.xlu0 %262
  %264 = vrot.lane.b32.xlu0 %v31, 112
  %v265 = vpop.permute.xlu0 %264
  %266 = vrot.lane.b32.xlu0 %v32, 112
  %v267 = vpop.permute.xlu0 %266
  %268 = vrot.lane.b32.xlu0 %v33, 112
  %v269 = vpop.permute.xlu0 %268
  %vm270 = vcmp.lt.s32.totalorder %v51, 112
  %v271 = vsel %vm270, %v267, %v269
  %v272 = vsel %vm270, %v265, %v267
  %v273 = vsel %vm270, %v263, %v265
  %v274 = vsel %vm270, %v269, %v263
  %v275 = vlaneseq
  %v276 = vshrl.u32 %v275, 7
  %v277 = vsub.s32 7, %v276
  %v278 = vrot.slane %v34, %v277
  %v279 = vlaneseq
  %v280 = vshrl.u32 %v279, 7
  %v281 = vsub.s32 7, %v280
  %v282 = vrot.slane %v35, %v281
  %v283 = vlaneseq
  %v284 = vshrl.u32 %v283, 7
  %v285 = vsub.s32 7, %v284
  %v286 = vrot.slane %v36, %v285
  %v287 = vlaneseq
  %v288 = vshrl.u32 %v287, 7
  %v289 = vsub.s32 7, %v288
  %v290 = vrot.slane %v37, %v289
  %v291 = vmul.f32 %v273, %v278
  %v292 = vmul.f32 %v272, %v282
  %v293 = vmul.f32 %v271, %v286
  %v294 = vmul.f32 %v274, %v290
  %295 = vrot.lane.b32.xlu0 %v30, 111
  %v296 = vpop.permute.xlu0 %295
  %297 = vrot.lane.b32.xlu0 %v31, 111
  %v298 = vpop.permute.xlu0 %297
  %299 = vrot.lane.b32.xlu0 %v32, 111
  %v300 = vpop.permute.xlu0 %299
  %301 = vrot.lane.b32.xlu0 %v33, 111
  %v302 = vpop.permute.xlu0 %301
  %vm303 = vcmp.lt.s32.totalorder %v51, 111
  %v304 = vsel %vm303, %v300, %v302
  %v305 = vsel %vm303, %v298, %v300
  %v306 = vsel %vm303, %v296, %v298
  %v307 = vsel %vm303, %v302, %v296
  %v308 = vlaneseq
  %v309 = vshrl.u32 %v308, 7
  %v310 = vsub.s32 0, %v309
  %v311 = vrot.slane %v38, %v310
  %v312 = vlaneseq
  %v313 = vshrl.u32 %v312, 7
  %v314 = vsub.s32 0, %v313
  %v315 = vrot.slane %v39, %v314
  %v316 = vlaneseq
  %v317 = vshrl.u32 %v316, 7
  %v318 = vsub.s32 0, %v317
  %v319 = vrot.slane %v40, %v318
  %v320 = vlaneseq
  %v321 = vshrl.u32 %v320, 7
  %v322 = vsub.s32 0, %v321
  %v323 = vrot.slane %v41, %v322
  %v324 = vmul.f32 %v306, %v311
  %v325 = vmul.f32 %v305, %v315
  %v326 = vmul.f32 %v304, %v319
  %v327 = vmul.f32 %v307, %v323
  %v328 = vpack.c.bf16 %v106, %v73
  %v329 = vpack.c.bf16 %v107, %v74
  %v330 = vpack.c.bf16 %v108, %v75
  %v331 = vpack.c.bf16 %v109, %v76
  %v332 = vpack.c.bf16 %v172, %v139
  %v333 = vpack.c.bf16 %v173, %v140
  %v334 = vpack.c.bf16 %v174, %v141
  %v335 = vpack.c.bf16 %v175, %v142
  %v336 = vpack.c.bf16 %v225, %v192
  %v337 = vpack.c.bf16 %v226, %v193
  %v338 = vpack.c.bf16 %v227, %v194
  %v339 = vpack.c.bf16 %v228, %v195
  %v340 = vpack.c.bf16 %v291, %v258
  %v341 = vpack.c.bf16 %v292, %v259
  %v342 = vpack.c.bf16 %v293, %v260
  %v343 = vpack.c.bf16 %v294, %v261
  %v344 = vpack.c.bf16 %v324, %v324
  %v345 = vpack.c.bf16 %v325, %v325
  %v346 = vpack.c.bf16 %v326, %v326
  %v347 = vpack.c.bf16 %v327, %v327
  %v348 = vld [vmem:[%s2] sm:$0xf]
  %vm349 = vcmask 588800
  %v351 = vsel %vm349, %v348, 0
  %vm353 = vcmask 1043456
  %v355 = vsel %vm353, %v344, 0
  %v358 = vsel %vm353, %v345, 0
  %v361 = vsel %vm353, %v346, 0
  %v364 = vsel %vm353, %v347, 0
  %366 = vmatprep.subr.bf16.mxu0 0
  %367 = vmatpush1.bf16.msra.mxu0 0
  %368 = vmatprep.subr.bf16.mxu0 0
  %369 = vmatpush1.bf16.msra.mxu0 0
  %370 = vmatprep.subr.bf16.mxu0 0
  %371 = vmatpush1.bf16.msra.mxu0 0
  %372 = vmatprep.subr.bf16.mxu0 %v358
  %373 = vmatpush1.bf16.msra.mxu0 %v355
  %374 = vmatprep.subr.bf16.mxu0 %v341
  %375 = vmatpush1.bf16.msra.mxu0 %v340
  %376 = vmatprep.subr.bf16.mxu0 %v337
  %377 = vmatpush1.bf16.msra.mxu0 %v336
  %378 = vmatprep.subr.bf16.mxu0 %v333
  %379 = vmatpush1.bf16.msra.mxu0 %v332
  %380 = vmatprep.subr.bf16.mxu0 %v329
  %381 = vmatpush1.bf16.msra.mxu0 %v328
  %382 = vmatprep.subr.bf16.mxu0 0
  %383 = vmatpush2.bf16.msra.mxu0 0
  %384 = vmatprep.subr.bf16.mxu0 0
  %385 = vmatpush2.bf16.msra.mxu0 0
  %386 = vmatprep.subr.bf16.mxu0 0
  %387 = vmatpush2.bf16.msra.mxu0 0
  %388 = vmatprep.subr.bf16.mxu0 0
  %389 = vmatpush2.bf16.msra.mxu0 0
  %390 = vmatprep.subr.bf16.mxu0 0
  %391 = vmatpush2.bf16.msra.mxu0 0
  %392 = vmatprep.subr.bf16.mxu0 0
  %393 = vmatpush2.bf16.msra.mxu0 0
  %394 = vmatprep.subr.bf16.mxu0 0
  %395 = vmatpush2.bf16.msra.mxu0 0
  %396 = vmatprep.subr.bf16.mxu0 0
  %397 = vmatpush2.bf16.msra.mxu0 0
  %398 = vmatprep.mubr.bf16.mxu0 0
  %399 = vmatmul.mubr.bf16.gmra.mxu0 %v351
  %v400 = vpop.f32.mrf.mxu0
  %v401 = vadd.f32 0.0, %v400
  %v402 = vpop.f32.mrf.mxu0
  %v403 = vadd.f32 0.0, %v402
  %v404 = vpop.f32.mrf.mxu0
  %v405 = vpop.f32.mrf.mxu0
  %406 = vdwg.mxu0
  %407 = vmatprep.subr.bf16.mxu0 0
  %408 = vmatpush1.bf16.msra.mxu0 0
  %409 = vmatprep.subr.bf16.mxu0 0
  %410 = vmatpush1.bf16.msra.mxu0 0
  %411 = vmatprep.subr.bf16.mxu0 0
  %412 = vmatpush1.bf16.msra.mxu0 0
  %413 = vmatprep.subr.bf16.mxu0 %v364
  %414 = vmatpush1.bf16.msra.mxu0 %v361
  %415 = vmatprep.subr.bf16.mxu0 %v343
  %416 = vmatpush1.bf16.msra.mxu0 %v342
  %417 = vmatprep.subr.bf16.mxu0 %v339
  %418 = vmatpush1.bf16.msra.mxu0 %v338
  %419 = vmatprep.subr.bf16.mxu0 %v335
  %420 = vmatpush1.bf16.msra.mxu0 %v334
  %421 = vmatprep.subr.bf16.mxu0 %v331
  %422 = vmatpush1.bf16.msra.mxu0 %v330
  %423 = vmatprep.subr.bf16.mxu0 0
  %424 = vmatpush2.bf16.msra.mxu0 0
  %425 = vmatprep.subr.bf16.mxu0 0
  %426 = vmatpush2.bf16.msra.mxu0 0
  %427 = vmatprep.subr.bf16.mxu0 0
  %428 = vmatpush2.bf16.msra.mxu0 0
  %429 = vmatprep.subr.bf16.mxu0 0
  %430 = vmatpush2.bf16.msra.mxu0 0
  %431 = vmatprep.subr.bf16.mxu0 0
  %432 = vmatpush2.bf16.msra.mxu0 0
  %433 = vmatprep.subr.bf16.mxu0 0
  %434 = vmatpush2.bf16.msra.mxu0 0
  %435 = vmatprep.subr.bf16.mxu0 0
  %436 = vmatpush2.bf16.msra.mxu0 0
  %437 = vmatprep.subr.bf16.mxu0 0
  %438 = vmatpush2.bf16.msra.mxu0 0
  %439 = vmatprep.mubr.bf16.mxu0 0
  %440 = vmatmul.mubr.bf16.gmra.mxu0 %v351
  %v441 = vpop.f32.mrf.mxu0
  %v442 = vadd.f32 0.0, %v441
  %v443 = vpop.f32.mrf.mxu0
  %v444 = vadd.f32 0.0, %v443
  %v445 = vpop.f32.mrf.mxu0
  %v446 = vpop.f32.mrf.mxu0
  %447 = vdwg.mxu0
  %v448 = vld [vmem:[%s3] sm:$0xff]
  %v449 = vld [vmem:[%s4] sm:$0xff]
  %v450 = vadd.f32 %v401, %v403
  %v451 = vadd.f32 %v450, %v442
  %v452 = vadd.f32 %v451, %v444
  %453 = vadd.xlane.f32.xlu0 %v452
  %v454 = vpop.xlane.xlu0 %453
  %v455 = vmul.f32 %v454, 0.001953125
  %v456 = vsub.f32 %v401, %v455
  %v457 = vsub.f32 %v403, %v455
  %v458 = vsub.f32 %v442, %v455
  %v459 = vsub.f32 %v444, %v455
  %v460 = vmul.f32 %v456, %v456
  %v461 = vmul.f32 %v457, %v457
  %v462 = vmul.f32 %v458, %v458
  %v463 = vmul.f32 %v459, %v459
  %v464 = vadd.f32 %v460, %v461
  %v465 = vadd.f32 %v464, %v462
  %v466 = vadd.f32 %v465, %v463
  %467 = vadd.xlane.f32.xlu0 %v466
  %v468 = vpop.xlane.xlu0 %467
  %v469 = vmul.f32 %v468, 0.001953125
  %v470 = vadd.f32 %v469, 1e-05
  %v471 = vrsqrt.pop %v470
  %v472 = vmul.f32 %v448, %v471
  %474 = vset.pattern.permute.xlu0 0
  %475 = vperm.xlu0 %474, %v472
  %v476 = vpop.permute.xlu0 %475
  %v478 = vmul.f32 %v456, %v476
  %v479 = vmul.f32 %v457, %v476
  %v480 = vmul.f32 %v458, %v476
  %v481 = vmul.f32 %v459, %v476
  %483 = vset.pattern.permute.xlu0 0
  %484 = vperm.xlu0 %483, %v449
  %v485 = vpop.permute.xlu0 %484
  %v487 = vadd.f32 %v478, %v485
  %v488 = vadd.f32 %v479, %v485
  %v489 = vadd.f32 %v480, %v485
  %v490 = vadd.f32 %v481, %v485
  %v491 = vmax.f32 %v487, 0.0
  %v492 = vmax.f32 %v488, 0.0
  %v493 = vmax.f32 %v489, 0.0
  %v494 = vmax.f32 %v490, 0.0
  %495 = vrot.lane.b32.xlu0 %v491, 17
  %v496 = vpop.permute.xlu0 %495
  %497 = vrot.lane.b32.xlu0 %v492, 17
  %v498 = vpop.permute.xlu0 %497
  %499 = vrot.lane.b32.xlu0 %v493, 17
  %v500 = vpop.permute.xlu0 %499
  %501 = vrot.lane.b32.xlu0 %v494, 17
  %v502 = vpop.permute.xlu0 %501
  %v503 = vsel %vm52, %v500, %v502
  %v504 = vsel %vm52, %v498, %v500
  %v505 = vsel %vm52, %v496, %v498
  %v506 = vsel %vm52, %v502, %v496
  %v507 = vmul.f32 %v506, %v60
  %v508 = vmul.f32 %v505, %v64
  %v509 = vmul.f32 %v504, %v68
  %v510 = vmul.f32 %v503, %v72
  %511 = vrot.lane.b32.xlu0 %v491, 16
  %v512 = vpop.permute.xlu0 %511
  %513 = vrot.lane.b32.xlu0 %v492, 16
  %v514 = vpop.permute.xlu0 %513
  %515 = vrot.lane.b32.xlu0 %v493, 16
  %v516 = vpop.permute.xlu0 %515
  %517 = vrot.lane.b32.xlu0 %v494, 16
  %v518 = vpop.permute.xlu0 %517
  %v519 = vsel %vm85, %v516, %v518
  %v520 = vsel %vm85, %v514, %v516
  %v521 = vsel %vm85, %v512, %v514
  %v522 = vsel %vm85, %v518, %v512
  %v523 = vmul.f32 %v522, %v93
  %v524 = vmul.f32 %v521, %v97
  %v525 = vmul.f32 %v520, %v101
  %v526 = vmul.f32 %v519, %v105
  %527 = vrot.lane.b32.xlu0 %v491, 15
  %v528 = vpop.permute.xlu0 %527
  %529 = vrot.lane.b32.xlu0 %v492, 15
  %v530 = vpop.permute.xlu0 %529
  %531 = vrot.lane.b32.xlu0 %v493, 15
  %v532 = vpop.permute.xlu0 %531
  %533 = vrot.lane.b32.xlu0 %v494, 15
  %v534 = vpop.permute.xlu0 %533
  %v535 = vsel %vm118, %v532, %v534
  %v536 = vsel %vm118, %v530, %v532
  %v537 = vsel %vm118, %v528, %v530
  %v538 = vsel %vm118, %v534, %v528
  %v539 = vmul.f32 %v538, %v126
  %v540 = vmul.f32 %v537, %v130
  %v541 = vmul.f32 %v536, %v134
  %v542 = vmul.f32 %v535, %v138
  %543 = vrot.lane.b32.xlu0 %v491, 1
  %v544 = vpop.permute.xlu0 %543
  %545 = vrot.lane.b32.xlu0 %v492, 1
  %v546 = vpop.permute.xlu0 %545
  %547 = vrot.lane.b32.xlu0 %v493, 1
  %v548 = vpop.permute.xlu0 %547
  %549 = vrot.lane.b32.xlu0 %v494, 1
  %v550 = vpop.permute.xlu0 %549
  %v551 = vsel %vm151, %v548, %v550
  %v552 = vsel %vm151, %v546, %v548
  %v553 = vsel %vm151, %v544, %v546
  %v554 = vsel %vm151, %v550, %v544
  %v555 = vmul.f32 %v554, %v159
  %v556 = vmul.f32 %v553, %v163
  %v557 = vmul.f32 %v552, %v167
  %v558 = vmul.f32 %v551, %v171
  %v559 = vmul.f32 %v491, %v179
  %v560 = vmul.f32 %v492, %v183
  %v561 = vmul.f32 %v493, %v187
  %v562 = vmul.f32 %v494, %v191
  %563 = vrot.lane.b32.xlu0 %v491, 127
  %v564 = vpop.permute.xlu0 %563
  %565 = vrot.lane.b32.xlu0 %v492, 127
  %v566 = vpop.permute.xlu0 %565
  %567 = vrot.lane.b32.xlu0 %v493, 127
  %v568 = vpop.permute.xlu0 %567
  %569 = vrot.lane.b32.xlu0 %v494, 127
  %v570 = vpop.permute.xlu0 %569
  %v571 = vsel %vm204, %v568, %v570
  %v572 = vsel %vm204, %v566, %v568
  %v573 = vsel %vm204, %v564, %v566
  %v574 = vsel %vm204, %v570, %v564
  %v575 = vmul.f32 %v573, %v212
  %v576 = vmul.f32 %v572, %v216
  %v577 = vmul.f32 %v571, %v220
  %v578 = vmul.f32 %v574, %v224
  %579 = vrot.lane.b32.xlu0 %v491, 113
  %v580 = vpop.permute.xlu0 %579
  %581 = vrot.lane.b32.xlu0 %v492, 113
  %v582 = vpop.permute.xlu0 %581
  %583 = vrot.lane.b32.xlu0 %v493, 113
  %v584 = vpop.permute.xlu0 %583
  %585 = vrot.lane.b32.xlu0 %v494, 113
  %v586 = vpop.permute.xlu0 %585
  %v587 = vsel %vm237, %v584, %v586
  %v588 = vsel %vm237, %v582, %v584
  %v589 = vsel %vm237, %v580, %v582
  %v590 = vsel %vm237, %v586, %v580
  %v591 = vmul.f32 %v589, %v245
  %v592 = vmul.f32 %v588, %v249
  %v593 = vmul.f32 %v587, %v253
  %v594 = vmul.f32 %v590, %v257
  %595 = vrot.lane.b32.xlu0 %v491, 112
  %v596 = vpop.permute.xlu0 %595
  %597 = vrot.lane.b32.xlu0 %v492, 112
  %v598 = vpop.permute.xlu0 %597
  %599 = vrot.lane.b32.xlu0 %v493, 112
  %v600 = vpop.permute.xlu0 %599
  %601 = vrot.lane.b32.xlu0 %v494, 112
  %v602 = vpop.permute.xlu0 %601
  %v603 = vsel %vm270, %v600, %v602
  %v604 = vsel %vm270, %v598, %v600
  %v605 = vsel %vm270, %v596, %v598
  %v606 = vsel %vm270, %v602, %v596
  %v607 = vmul.f32 %v605, %v278
  %v608 = vmul.f32 %v604, %v282
  %v609 = vmul.f32 %v603, %v286
  %v610 = vmul.f32 %v606, %v290
  %611 = vrot.lane.b32.xlu0 %v491, 111
  %v612 = vpop.permute.xlu0 %611
  %613 = vrot.lane.b32.xlu0 %v492, 111
  %v614 = vpop.permute.xlu0 %613
  %615 = vrot.lane.b32.xlu0 %v493, 111
  %v616 = vpop.permute.xlu0 %615
  %617 = vrot.lane.b32.xlu0 %v494, 111
  %v618 = vpop.permute.xlu0 %617
  %v619 = vsel %vm303, %v616, %v618
  %v620 = vsel %vm303, %v614, %v616
  %v621 = vsel %vm303, %v612, %v614
  %v622 = vsel %vm303, %v618, %v612
  %v623 = vmul.f32 %v621, %v311
  %v624 = vmul.f32 %v620, %v315
  %v625 = vmul.f32 %v619, %v319
  %v626 = vmul.f32 %v622, %v323
  %v627 = vpack.c.bf16 %v523, %v507
  %v628 = vpack.c.bf16 %v524, %v508
  %v629 = vpack.c.bf16 %v525, %v509
  %v630 = vpack.c.bf16 %v526, %v510
  %v631 = vpack.c.bf16 %v555, %v539
  %v632 = vpack.c.bf16 %v556, %v540
  %v633 = vpack.c.bf16 %v557, %v541
  %v634 = vpack.c.bf16 %v558, %v542
  %v635 = vpack.c.bf16 %v575, %v559
  %v636 = vpack.c.bf16 %v576, %v560
  %v637 = vpack.c.bf16 %v577, %v561
  %v638 = vpack.c.bf16 %v578, %v562
  %v639 = vpack.c.bf16 %v607, %v591
  %v640 = vpack.c.bf16 %v608, %v592
  %v641 = vpack.c.bf16 %v609, %v593
  %v642 = vpack.c.bf16 %v610, %v594
  %v643 = vpack.c.bf16 %v623, %v623
  %v644 = vpack.c.bf16 %v624, %v624
  %v645 = vpack.c.bf16 %v625, %v625
  %v646 = vpack.c.bf16 %v626, %v626
  %v647 = vld [vmem:[%s5] sm:$0xf]
  %v649 = vsel %vm349, %v647, 0
  %v652 = vsel %vm353, %v643, 0
  %v655 = vsel %vm353, %v644, 0
  %v658 = vsel %vm353, %v645, 0
  %v661 = vsel %vm353, %v646, 0
  %663 = vmatprep.subr.bf16.mxu0 0
  %664 = vmatpush1.bf16.msra.mxu0 0
  %665 = vmatprep.subr.bf16.mxu0 0
  %666 = vmatpush1.bf16.msra.mxu0 0
  %667 = vmatprep.subr.bf16.mxu0 0
  %668 = vmatpush1.bf16.msra.mxu0 0
  %669 = vmatprep.subr.bf16.mxu0 %v655
  %670 = vmatpush1.bf16.msra.mxu0 %v652
  %671 = vmatprep.subr.bf16.mxu0 %v640
  %672 = vmatpush1.bf16.msra.mxu0 %v639
  %673 = vmatprep.subr.bf16.mxu0 %v636
  %674 = vmatpush1.bf16.msra.mxu0 %v635
  %675 = vmatprep.subr.bf16.mxu0 %v632
  %676 = vmatpush1.bf16.msra.mxu0 %v631
  %677 = vmatprep.subr.bf16.mxu0 %v628
  %678 = vmatpush1.bf16.msra.mxu0 %v627
  %679 = vmatprep.subr.bf16.mxu0 0
  %680 = vmatpush2.bf16.msra.mxu0 0
  %681 = vmatprep.subr.bf16.mxu0 0
  %682 = vmatpush2.bf16.msra.mxu0 0
  %683 = vmatprep.subr.bf16.mxu0 0
  %684 = vmatpush2.bf16.msra.mxu0 0
  %685 = vmatprep.subr.bf16.mxu0 0
  %686 = vmatpush2.bf16.msra.mxu0 0
  %687 = vmatprep.subr.bf16.mxu0 0
  %688 = vmatpush2.bf16.msra.mxu0 0
  %689 = vmatprep.subr.bf16.mxu0 0
  %690 = vmatpush2.bf16.msra.mxu0 0
  %691 = vmatprep.subr.bf16.mxu0 0
  %692 = vmatpush2.bf16.msra.mxu0 0
  %693 = vmatprep.subr.bf16.mxu0 0
  %694 = vmatpush2.bf16.msra.mxu0 0
  %695 = vmatprep.mubr.bf16.mxu0 0
  %696 = vmatmul.mubr.bf16.gmra.mxu0 %v649
  %v697 = vpop.f32.mrf.mxu0
  %v698 = vadd.f32 0.0, %v697
  %v699 = vpop.f32.mrf.mxu0
  %v700 = vadd.f32 0.0, %v699
  %v701 = vpop.f32.mrf.mxu0
  %v702 = vpop.f32.mrf.mxu0
  %703 = vdwg.mxu0
  %704 = vmatprep.subr.bf16.mxu0 0
  %705 = vmatpush1.bf16.msra.mxu0 0
  %706 = vmatprep.subr.bf16.mxu0 0
  %707 = vmatpush1.bf16.msra.mxu0 0
  %708 = vmatprep.subr.bf16.mxu0 0
  %709 = vmatpush1.bf16.msra.mxu0 0
  %710 = vmatprep.subr.bf16.mxu0 %v661
  %711 = vmatpush1.bf16.msra.mxu0 %v658
  %712 = vmatprep.subr.bf16.mxu0 %v642
  %713 = vmatpush1.bf16.msra.mxu0 %v641
  %714 = vmatprep.subr.bf16.mxu0 %v638
  %715 = vmatpush1.bf16.msra.mxu0 %v637
  %716 = vmatprep.subr.bf16.mxu0 %v634
  %717 = vmatpush1.bf16.msra.mxu0 %v633
  %718 = vmatprep.subr.bf16.mxu0 %v630
  %719 = vmatpush1.bf16.msra.mxu0 %v629
  %720 = vmatprep.subr.bf16.mxu0 0
  %721 = vmatpush2.bf16.msra.mxu0 0
  %722 = vmatprep.subr.bf16.mxu0 0
  %723 = vmatpush2.bf16.msra.mxu0 0
  %724 = vmatprep.subr.bf16.mxu0 0
  %725 = vmatpush2.bf16.msra.mxu0 0
  %726 = vmatprep.subr.bf16.mxu0 0
  %727 = vmatpush2.bf16.msra.mxu0 0
  %728 = vmatprep.subr.bf16.mxu0 0
  %729 = vmatpush2.bf16.msra.mxu0 0
  %730 = vmatprep.subr.bf16.mxu0 0
  %731 = vmatpush2.bf16.msra.mxu0 0
  %732 = vmatprep.subr.bf16.mxu0 0
  %733 = vmatpush2.bf16.msra.mxu0 0
  %734 = vmatprep.subr.bf16.mxu0 0
  %735 = vmatpush2.bf16.msra.mxu0 0
  %736 = vmatprep.mubr.bf16.mxu0 0
  %737 = vmatmul.mubr.bf16.gmra.mxu0 %v649
  %v738 = vpop.f32.mrf.mxu0
  %v739 = vadd.f32 0.0, %v738
  %v740 = vpop.f32.mrf.mxu0
  %v741 = vadd.f32 0.0, %v740
  %v742 = vpop.f32.mrf.mxu0
  %v743 = vpop.f32.mrf.mxu0
  %744 = vdwg.mxu0
  %v745 = vld [vmem:[%s6] sm:$0xff]
  %v746 = vld [vmem:[%s7] sm:$0xff]
  %v747 = vadd.f32 %v698, %v700
  %v748 = vadd.f32 %v747, %v739
  %v749 = vadd.f32 %v748, %v741
  %750 = vadd.xlane.f32.xlu0 %v749
  %v751 = vpop.xlane.xlu0 %750
  %v752 = vmul.f32 %v751, 0.001953125
  %v753 = vsub.f32 %v698, %v752
  %v754 = vsub.f32 %v700, %v752
  %v755 = vsub.f32 %v739, %v752
  %v756 = vsub.f32 %v741, %v752
  %v757 = vmul.f32 %v753, %v753
  %v758 = vmul.f32 %v754, %v754
  %v759 = vmul.f32 %v755, %v755
  %v760 = vmul.f32 %v756, %v756
  %v761 = vadd.f32 %v757, %v758
  %v762 = vadd.f32 %v761, %v759
  %v763 = vadd.f32 %v762, %v760
  %764 = vadd.xlane.f32.xlu0 %v763
  %v765 = vpop.xlane.xlu0 %764
  %v766 = vmul.f32 %v765, 0.001953125
  %v767 = vadd.f32 %v766, 1e-05
  %v768 = vrsqrt.pop %v767
  %v769 = vmul.f32 %v745, %v768
  %771 = vset.pattern.permute.xlu0 0
  %772 = vperm.xlu0 %771, %v769
  %v773 = vpop.permute.xlu0 %772
  %v775 = vmul.f32 %v753, %v773
  %v776 = vmul.f32 %v754, %v773
  %v777 = vmul.f32 %v755, %v773
  %v778 = vmul.f32 %v756, %v773
  %780 = vset.pattern.permute.xlu0 0
  %781 = vperm.xlu0 %780, %v746
  %v782 = vpop.permute.xlu0 %781
  %v784 = vadd.f32 %v775, %v782
  %v785 = vadd.f32 %v776, %v782
  %v786 = vadd.f32 %v777, %v782
  %v787 = vadd.f32 %v778, %v782
  %v788 = vadd.f32 %v784, %v30
  %v789 = vadd.f32 %v785, %v31
  %v790 = vadd.f32 %v786, %v32
  %v791 = vadd.f32 %v787, %v33
  %v792 = vmax.f32 %v788, 0.0
  %v793 = vmax.f32 %v789, 0.0
  %v794 = vmax.f32 %v790, 0.0
  %v795 = vmax.f32 %v791, 0.0
  %796 = vst [vmem:[%s8] sm:$0xff] %v792
  %797 = vst [vmem:[%s8 + $0x8] sm:$0xff] %v793
  %798 = vst [vmem:[%s8 + $0x10] sm:$0xff] %v794
  %799 = vst [vmem:[%s8 + $0x18] sm:$0xff] %v795
  // Predicated region
  $region34: #{basic_block_forward.1} parent=0 // pred_check
    _
  $region35: #{basic_block_forward.1} parent=0 // pred_check_branch
    %801 = sbr.rel (0) target = $region37
  $region36: #{basic_block_forward.1} parent=0 // pred_region
    _
  $region37: #{basic_block_forward.1} parent=0 // pred_fallthru
    _
  // Predicated region
  $region38: #{basic_block_forward.1} parent=0 // pred_check
    _
  $region39: #{basic_block_forward.1} parent=0 // pred_check_branch
    %803 = sbr.rel (0) target = $region41
  $region40: #{basic_block_forward.1} parent=0 // pred_region
    _
  $region41: #{basic_block_forward.1} parent=0 // pred_fallthru
    _

</llo_original>
